<compile_context>
chip_gen: v6e
topology: v6e:2x2x1
jax: 0.10.0
libtpu: 0.0.40
codegen_flags: <defaults>
</compile_context>

<pallas_src>
import functools

import jax
import jax.numpy as jnp
from jax import lax
from jax.experimental import pallas as pl
from jax.experimental.pallas import tpu as pltpu


def mlp_kernel(x_ref, w1_ref, b1_ref, w2_ref, b2_ref, ot_ref):
    """One batch tile: x (tb, 44) -> out^T (4, tb)."""
    mxu_dtype = w1_ref.dtype  # bf16 (default) or f32
    # Layer 1 on the MXU: (tb, 44) @ (44, 256), bf16 inputs, f32 accumulation.
    h = jnp.dot(x_ref[...].astype(mxu_dtype), w1_ref[...],
                preferred_element_type=jnp.float32)
    h = jnp.maximum(h + b1_ref[...], 0.0)  # bias + ReLU in f32 on the VPU
    # Layer 2, lane-dense transposed output: w2 (4, 256) contracted against the
    # last dim of h (tb, 256) -> (4, tb).
    out_t = lax.dot_general(
        w2_ref[...], h.astype(mxu_dtype),
        dimension_numbers=(((1,), (1,)), ((), ())),
        preferred_element_type=jnp.float32)
    ot_ref[...] = (out_t + b2_ref[...]).astype(ot_ref.dtype)


@functools.partial(jax.jit, static_argnames=("tile_b", "use_bf16"))
def mlp_forward(x, w1, b1, w2, b2, *, tile_b=8192, use_bf16=True):
    """x: (B, 44) f32.  w1: (256, 44), b1: (256,), w2: (4, 256), b2: (4,)
    in torch nn.Linear layout.  Returns (B, 4) f32."""
    B, K = x.shape
    H = w1.shape[0]   # 256
    N = w2.shape[0]   # 4

    # Batch tile: tile_b rows per grid step for large B (masked partial edge
    # block when B % tile_b != 0), otherwise one full-extent block.  No jnp.pad
    # of x - that would re-materialize the dominant HBM stream.
    tb = tile_b if B > tile_b else B
    grid = (pl.cdiv(B, tb),)

    mxu_dtype = jnp.bfloat16 if use_bf16 else jnp.float32
    w1_t = w1.T.astype(mxu_dtype)            # (44, 256)  VMEM-resident
    w2_c = w2.astype(mxu_dtype)              # (4, 256)   VMEM-resident
    b1_2d = b1.reshape(1, H).astype(jnp.float32)
    b2_2d = b2.reshape(N, 1).astype(jnp.float32)

    out_t = pl.pallas_call(
        mlp_kernel,
        out_shape=jax.ShapeDtypeStruct((N, B), jnp.float32),
        grid=grid,
        in_specs=[
            # Streamed, double-buffered batch tiles of x (still f32 in HBM;
            # cast to bf16 in-kernel).
            pl.BlockSpec((tb, K), lambda i: (i, 0)),
            # Weights / biases: constant index_map -> fetched once, resident.
            pl.BlockSpec((K, H), lambda i: (0, 0)),
            pl.BlockSpec((1, H), lambda i: (0, 0)),
            pl.BlockSpec((N, H), lambda i: (0, 0)),
            pl.BlockSpec((N, 1), lambda i: (0, 0)),
        ],
        # Lane-dense transposed output tiles.
        out_specs=pl.BlockSpec((N, tb), lambda i: (0, i)),
        compiler_params=pltpu.CompilerParams(
            dimension_semantics=("parallel",),       # megacore-shard the batch axis
            vmem_limit_bytes=56 * 1024 * 1024,       # fits v7x 64 MiB/TC
        ),
    )(x, w1_t, b1_2d, w2_c, b2_2d)

    # Restore the module's (B, 4) layout (cheap: 16 B/row).  Consumers that can
    # take feature-major (4, B) output should use out_t directly.
    return out_t.T


def init_params(key):
    # Matches nn.init.normal_(weight, mean=0, std=0.01), zeros_(bias);
    # torch nn.Linear layout (out_features, in_features).
    k1, k2 = jax.random.split(key)
    w1 = 0.01 * jax.random.normal(k1, (256, 44), dtype=jnp.float32)
    b1 = jnp.zeros((256,), dtype=jnp.float32)
    w2 = 0.01 * jax.random.normal(k2, (4, 256), dtype=jnp.float32)
    b2 = jnp.zeros((4,), dtype=jnp.float32)
    return w1, b1, w2, b2


if __name__ == "__main__":
    key = jax.random.PRNGKey(0)
    k_x, k_p = jax.random.split(key)
    w1, b1, w2, b2 = init_params(k_p)

    def ref_fn(xv):
        return jnp.maximum(xv @ w1.T + b1, 0.0) @ w2.T + b2

    # Small single-block batch, exact f32 MXU path.
    B = 8
    x = jax.random.normal(k_x, (B, 44), dtype=jnp.float32)
    out = jax.block_until_ready(mlp_forward(x, w1, b1, w2, b2, use_bf16=False))
    assert out.shape == (B, 4)
    assert jnp.allclose(out, ref_fn(x), atol=1e-5, rtol=1e-5)

    # Multi-tile pipelined path with a ragged batch: grid=3, masked partial
    # edge block, no jnp.pad.  f32 path for a tight check.
    B2 = 300
    x2 = jax.random.normal(k_x, (B2, 44), dtype=jnp.float32)
    out2 = jax.block_until_ready(
        mlp_forward(x2, w1, b1, w2, b2, tile_b=128, use_bf16=False))
    assert out2.shape == (B2, 4)
    assert jnp.allclose(out2, ref_fn(x2), atol=1e-5, rtol=1e-5)

    # Default in-kernel bf16 MXU path (f32 accumulation), looser tolerance.
    out3 = jax.block_until_ready(mlp_forward(x2, w1, b1, w2, b2, tile_b=128))
    assert out3.shape == (B2, 4)
    assert jnp.allclose(out3, ref_fn(x2), atol=1e-2, rtol=1e-1)

    print("KERNEL_OK")
</pallas_src>

<mosaic_0001>
module attributes {stable_mosaic.version = 11 : i64} {
  func.func @mlp_kernel(%arg0: i32, %arg1: memref<8x44xf32, #tpu.memory_space<vmem>>, %arg2: memref<44x256xf32, #tpu.memory_space<vmem>>, %arg3: memref<1x256xf32, #tpu.memory_space<vmem>>, %arg4: memref<4x256xf32, #tpu.memory_space<vmem>>, %arg5: memref<4x1xf32, #tpu.memory_space<vmem>>, %arg6: memref<4x8xf32, #tpu.memory_space<vmem>>) attributes {dimension_semantics = [#tpu.dimension_semantics<parallel>], iteration_bounds = array<i64: 1>, scalar_prefetch = 0 : i64, scratch_operands = 0 : i64, tpu.core_type = #tpu.core_type<tc>, window_params = [{transform_indices = @transform_0, window_bounds = array<i64: 8, 44>}, {pipeline_mode = #tpu.pipeline_mode<synchronous>, transform_indices = @transform_1, window_bounds = array<i64: 44, 256>}, {pipeline_mode = #tpu.pipeline_mode<synchronous>, transform_indices = @transform_2, window_bounds = array<i64: 1, 256>}, {pipeline_mode = #tpu.pipeline_mode<synchronous>, transform_indices = @transform_3, window_bounds = array<i64: 4, 256>}, {pipeline_mode = #tpu.pipeline_mode<synchronous>, transform_indices = @transform_4, window_bounds = array<i64: 4, 1>}, {transform_indices = @transform_5, window_bounds = array<i64: 4, 8>}]} {
    %c0 = arith.constant 0 : index
    %c0_0 = arith.constant 0 : index
    %0 = vector.load %arg1[%c0, %c0_0] : memref<8x44xf32, #tpu.memory_space<vmem>>, vector<8x44xf32>
    %c0_1 = arith.constant 0 : index
    %c0_2 = arith.constant 0 : index
    %1 = vector.load %arg2[%c0_1, %c0_2] : memref<44x256xf32, #tpu.memory_space<vmem>>, vector<44x256xf32>
    %cst = arith.constant dense<0.000000e+00> : vector<8x256xf32>
    %2 = tpu.matmul %0, %1, %cst {dimension_numbers = #tpu.dot_dimension_numbers<[1], [0], [0], [1], [0, 0, 1, 1], [], []>} : vector<8x44xf32>, vector<44x256xf32>, vector<8x256xf32> -> vector<8x256xf32>
    %c0_3 = arith.constant 0 : index
    %c0_4 = arith.constant 0 : index
    %3 = vector.load %arg3[%c0_3, %c0_4] : memref<1x256xf32, #tpu.memory_space<vmem>>, vector<1x256xf32>
    %4 = vector.broadcast %3 : vector<1x256xf32> to vector<8x256xf32>
    %5 = arith.addf %2, %4 : vector<8x256xf32>
    %cst_5 = arith.constant 0.000000e+00 : f32
    %6 = vector.broadcast %cst_5 : f32 to vector<8x256xf32>
    %7 = arith.maximumf %5, %6 : vector<8x256xf32>
    %c0_6 = arith.constant 0 : index
    %c0_7 = arith.constant 0 : index
    %8 = vector.load %arg4[%c0_6, %c0_7] : memref<4x256xf32, #tpu.memory_space<vmem>>, vector<4x256xf32>
    %cst_8 = arith.constant dense<0.000000e+00> : vector<4x8xf32>
    %9 = tpu.matmul %8, %7, %cst_8 {dimension_numbers = #tpu.dot_dimension_numbers<[1], [1], [0], [0], [0, 0, 1, 0], [], []>} : vector<4x256xf32>, vector<8x256xf32>, vector<4x8xf32> -> vector<4x8xf32>
    %c0_9 = arith.constant 0 : index
    %c0_10 = arith.constant 0 : index
    %10 = vector.load %arg5[%c0_9, %c0_10] : memref<4x1xf32, #tpu.memory_space<vmem>>, vector<4x1xf32>
    %11 = vector.broadcast %10 : vector<4x1xf32> to vector<4x8xf32>
    %12 = arith.addf %9, %11 : vector<4x8xf32>
    %c0_11 = arith.constant 0 : index
    %c0_12 = arith.constant 0 : index
    %13 = vector.load %arg6[%c0_11, %c0_12] : memref<4x8xf32, #tpu.memory_space<vmem>>, vector<4x8xf32>
    tpu.vector_store %arg6[%c0_11, %c0_12], %12 {strides = array<i32>} : memref<4x8xf32, #tpu.memory_space<vmem>>, vector<4x8xf32>,
    return
  }
  func.func @transform_0(%arg0: i32) -> (i32, i32) {
    %c0_i32 = arith.constant 0 : i32
    %c0_i32_0 = arith.constant 0 : i32
    return %arg0, %c0_i32 : i32, i32
  }
  func.func @transform_1(%arg0: i32) -> (i32, i32) {
    %c0_i32 = arith.constant 0 : i32
    %c0_i32_0 = arith.constant 0 : i32
    %c0_i32_1 = arith.constant 0 : i32
    return %c0_i32, %c0_i32_0 : i32, i32
  }
  func.func @transform_2(%arg0: i32) -> (i32, i32) {
    %c0_i32 = arith.constant 0 : i32
    %c0_i32_0 = arith.constant 0 : i32
    %c0_i32_1 = arith.constant 0 : i32
    return %c0_i32, %c0_i32_0 : i32, i32
  }
  func.func @transform_3(%arg0: i32) -> (i32, i32) {
    %c0_i32 = arith.constant 0 : i32
    %c0_i32_0 = arith.constant 0 : i32
    %c0_i32_1 = arith.constant 0 : i32
    return %c0_i32, %c0_i32_0 : i32, i32
  }
  func.func @transform_4(%arg0: i32) -> (i32, i32) {
    %c0_i32 = arith.constant 0 : i32
    %c0_i32_0 = arith.constant 0 : i32
    %c0_i32_1 = arith.constant 0 : i32
    return %c0_i32, %c0_i32_0 : i32, i32
  }
  func.func @transform_5(%arg0: i32) -> (i32, i32) {
    %c0_i32 = arith.constant 0 : i32
    %c0_i32_0 = arith.constant 0 : i32
    return %c0_i32, %arg0 : i32, i32
  }
}

</mosaic_0001>

<llo_original>
// kernel: mlp_forward.1
$region0: #{mlp_forward.1}
  #allocation0 [shape = 'u32[]', space=smem, size = 0x4, offset = 0x4, fixed_abs, tag = 'smem constant byte address 0x4 - core index']
  #allocation1 [shape = 'u32[144,128]{1,0:T(1,128)}', space=vmem, size = 0x12000, scoped, tag = 'internal scratch']
  %s0 = inlined_call_operand.vmem [shape: f32[8,44], index: 0, kind: input, shape index: {}]
  %s1 = inlined_call_operand.hbm [shape: f32[44,256], index: 1, kind: input, shape index: {}]
  %s2 = inlined_call_operand.vmem [shape: f32[1,256], index: 2, kind: input, shape index: {}]
  %s3 = inlined_call_operand.hbm [shape: f32[4,256], index: 3, kind: input, shape index: {}]
  %s4 = inlined_call_operand.vmem [shape: f32[4,1], index: 4, kind: input, shape index: {}]
  %s5 = inlined_call_operand.hbm [shape: f32[4,8], index: 5, kind: output, shape index: {}]
  %s6 = sld [smem:[#allocation0]]
  $region38: #{mlp_forward.1} parent=0
    _
  %s8 = ssub.s32 1, %s6
  %s9 = scalar_select 0, %s8, %s6
  $region1: #{mlp_forward.1} parent=0
    #allocation2 [shape = 'u8[49152]{0}', space=vmem, size = 0xc000, scoped, tag = 'input window, operand 1, single buffered']
    #allocation3 [shape = 's32[1]{0}', space=sflag, size = 0x4, scoped, tag = 'scoped memory for mlp_forward.1']
    #allocation4 [shape = 's32[1]{0}', space=sflag, size = 0x4, scoped, tag = 'scoped memory for mlp_forward.1']
    #allocation5 [shape = 'u8[4096]{0}', space=vmem, size = 0x1000, scoped, tag = 'input window, operand 3, single buffered']
    #allocation6 [shape = 's32[1]{0}', space=sflag, size = 0x4, scoped, tag = 'scoped memory for mlp_forward.1']
    #allocation7 [shape = 'u8[2048]{0}', space=vmem, size = 0x800, scoped, tag = 'output window, operand 0, single buffered']
    %10 = vsyncpa [#allocation3], 0
    %11 = vsyncpa [#allocation6], 0
    %12 = vsyncpa [#allocation4], 0
    // Predicated region
    $region2: #{mlp_forward.1} parent=1 // pred_check
      _
    $region3: #{mlp_forward.1} parent=1 // pred_check_branch
      %14 = sbr.rel (0) target = $region5
    $region4: #{mlp_forward.1} parent=1 // pred_region
      _
    $region5: #{mlp_forward.1} parent=1 // pred_fallthru
      _
    // Predicated region
    $region6: #{mlp_forward.1} parent=1 // pred_check
      _
    $region7: #{mlp_forward.1} parent=1 // pred_check_branch
      %16 = sbr.rel (0) target = $region9
    $region8: #{mlp_forward.1} parent=1 // pred_region
      %s18 = ssub.s32 1536, 1536
      %19 = vsyncadd [#allocation3], %s18
      %s20 = sshll.u32 [#allocation2], 4
      %s21 = int_to_ptr.vmem [resolvable:$true] %s20
      %26 = dma.hbm_to_vmem [thread:$0]  %s1, 1536, %s21, [#allocation3], 256, 256, 16
    $region9: #{mlp_forward.1} parent=1 // pred_fallthru
      _
    // Predicated region
    $region10: #{mlp_forward.1} parent=1 // pred_check
      _
    $region11: #{mlp_forward.1} parent=1 // pred_check_branch
      %28 = sbr.rel (0) target = $region13
    $region12: #{mlp_forward.1} parent=1 // pred_region
      _
    $region13: #{mlp_forward.1} parent=1 // pred_fallthru
      _
    // Predicated region
    $region14: #{mlp_forward.1} parent=1 // pred_check
      _
    $region15: #{mlp_forward.1} parent=1 // pred_check_branch
      %30 = sbr.rel (0) target = $region17
    $region16: #{mlp_forward.1} parent=1 // pred_region
      %s32 = ssub.s32 128, 128
      %33 = vsyncadd [#allocation6], %s32
      %s35 = sshll.u32 [#allocation5], 4
      %s36 = int_to_ptr.vmem [resolvable:$true] %s35
      %38 = dma.hbm_to_vmem [thread:$0]  %s3, 128, %s36, [#allocation6]
    $region17: #{mlp_forward.1} parent=1 // pred_fallthru
      _
    // Predicated region
    $region18: #{mlp_forward.1} parent=1 // pred_check
      _
    $region19: #{mlp_forward.1} parent=1 // pred_check_branch
      %40 = sbr.rel (0) target = $region21
    $region20: #{mlp_forward.1} parent=1 // pred_region
      _
    $region21: #{mlp_forward.1} parent=1 // pred_fallthru
      _
    // Predicated region
    $region22: #{mlp_forward.1} parent=1 // pred_check
      _
    $region23: #{mlp_forward.1} parent=1 // pred_check_branch
      %42 = sbr.rel (0) target = $region25
    $region24: #{mlp_forward.1} parent=1 // pred_region
      %43 = dma.done [#allocation3], 1536
    $region25: #{mlp_forward.1} parent=1 // pred_fallthru
      _
    // Predicated region
    $region26: #{mlp_forward.1} parent=1 // pred_check
      _
    $region27: #{mlp_forward.1} parent=1 // pred_check_branch
      %45 = sbr.rel (0) target = $region29
    $region28: #{mlp_forward.1} parent=1 // pred_region
      %46 = dma.done [#allocation6], 128
    $region29: #{mlp_forward.1} parent=1 // pred_fallthru
      _
    %v47 = vld [vmem:[%s0] sm:$0xff]
    %v48 = vld [vmem:[#allocation2] sm:$0xff]
    %v49 = vld [vmem:[#allocation2 + $0x8] sm:$0xff]
    %v50 = vld [vmem:[#allocation2 + $0x10] sm:$0xff]
    %v51 = vld [vmem:[#allocation2 + $0x18] sm:$0xff]
    %v52 = vld [vmem:[#allocation2 + $0x20] sm:$0xff]
    %v53 = vld [vmem:[#allocation2 + $0x28] sm:$0xff]
    %v54 = vld [vmem:[#allocation2 + $0x30] sm:$0xff]
    %v55 = vld [vmem:[#allocation2 + $0x38] sm:$0xff]
    %v56 = vld [vmem:[#allocation2 + $0x40] sm:$0xff]
    %v57 = vld [vmem:[#allocation2 + $0x48] sm:$0xff]
    %v58 = vld [vmem:[#allocation2 + $0x50] sm:$0xf]
    %v59 = vld [vmem:[#allocation2 + $0x58] sm:$0xf]
    %v60 = vld [vmem:[%s2] sm:$0x3]
    %v62 = vlaneseq
    %v63 = vshrl.u32 %v62, 7
    %v64 = vsub.s32 0, %v63
    %v65 = vrot.slane %v60, %v64
    %v66 = vlaneseq
    %v67 = vshrl.u32 %v66, 7
    %v68 = vsub.s32 1, %v67
    %v69 = vrot.slane %v60, %v68
    %vm72 = vcmask 359424
    %v74 = vsel %vm72, %v47, 0
    %vm76 = vcmask 1043456
    %v78 = vsel %vm76, %v58, 0
    %v81 = vsel %vm76, %v59, 0
    %83 = vmatprep.subr.mxu0 0.0
    %84 = vmatpush1.msra.mxu0 0.0
    %85 = vmatprep.subr.mxu0 0.0
    %86 = vmatpush1.msra.mxu0 0.0
    %87 = vmatprep.subr.mxu0 0.0
    %88 = vmatpush1.msra.mxu0 0.0
    %89 = vmatprep.subr.mxu0 0.0
    %90 = vmatpush1.msra.mxu0 0.0
    %91 = vmatprep.subr.mxu0 0.0
    %92 = vmatpush1.msra.mxu0 0.0
    %93 = vmatprep.subr.mxu0 0.0
    %94 = vmatpush1.msra.mxu0 0.0
    %95 = vmatprep.subr.mxu0 0.0
    %96 = vmatpush1.msra.mxu0 0.0
    %97 = vmatprep.subr.mxu0 0.0
    %98 = vmatpush1.msra.mxu0 0.0
    %99 = vmatprep.subr.mxu0 0.0
    %100 = vmatpush1.msra.mxu0 0.0
    %101 = vmatprep.subr.mxu0 0.0
    %102 = vmatpush1.msra.mxu0 0.0
    %103 = vmatprep.subr.mxu0 %v81
    %104 = vmatpush1.msra.mxu0 %v78
    %105 = vmatprep.subr.mxu0 %v57
    %106 = vmatpush1.msra.mxu0 %v56
    %107 = vmatprep.subr.mxu0 %v55
    %108 = vmatpush1.msra.mxu0 %v54
    %109 = vmatprep.subr.mxu0 %v53
    %110 = vmatpush1.msra.mxu0 %v52
    %111 = vmatprep.subr.mxu0 %v51
    %112 = vmatpush1.msra.mxu0 %v50
    %113 = vmatprep.subr.mxu0 %v49
    %114 = vmatpush1.msra.mxu0 %v48
    %115 = vmatprep.subr.mxu0 0.0
    %116 = vmatpush2.msra.mxu0 0.0
    %117 = vmatprep.subr.mxu0 0.0
    %118 = vmatpush2.msra.mxu0 0.0
    %119 = vmatprep.subr.mxu0 0.0
    %120 = vmatpush2.msra.mxu0 0.0
    %121 = vmatprep.subr.mxu0 0.0
    %122 = vmatpush2.msra.mxu0 0.0
    %123 = vmatprep.subr.mxu0 0.0
    %124 = vmatpush2.msra.mxu0 0.0
    %125 = vmatprep.subr.mxu0 0.0
    %126 = vmatpush2.msra.mxu0 0.0
    %127 = vmatprep.subr.mxu0 0.0
    %128 = vmatpush2.msra.mxu0 0.0
    %129 = vmatprep.subr.mxu0 0.0
    %130 = vmatpush2.msra.mxu0 0.0
    %131 = vmatprep.subr.mxu0 0.0
    %132 = vmatpush2.msra.mxu0 0.0
    %133 = vmatprep.subr.mxu0 0.0
    %134 = vmatpush2.msra.mxu0 0.0
    %135 = vmatprep.subr.mxu0 0.0
    %136 = vmatpush2.msra.mxu0 0.0
    %137 = vmatprep.subr.mxu0 0.0
    %138 = vmatpush2.msra.mxu0 0.0
    %139 = vmatprep.subr.mxu0 0.0
    %140 = vmatpush2.msra.mxu0 0.0
    %141 = vmatprep.subr.mxu0 0.0
    %142 = vmatpush2.msra.mxu0 0.0
    %143 = vmatprep.subr.mxu0 0.0
    %144 = vmatpush2.msra.mxu0 0.0
    %145 = vmatprep.subr.mxu0 0.0
    %146 = vmatpush2.msra.mxu0 0.0
    %147 = vmatprep.mubr.f32.mxu0 0.0
    %148 = vmatmul.mubr.f32.gmra.mxu0 %v74
    %v149 = vpop.f32.mrf.mxu0
    %v150 = vadd.f32 %v65, %v149
    %v151 = vpop.f32.mrf.mxu0
    %v152 = vadd.f32 %v69, %v151
    %153 = vdwg.mxu0
    %v154 = vmax.f32 %v150, 0.0
    %v155 = vmax.f32 %v152, 0.0
    %v156 = vld [vmem:[#allocation5] sm:$0xff]
    %v157 = vld [vmem:[%s4] sm:$0xf]
    %159 = vset.pattern.permute.xlu0 0
    %160 = vperm.xlu0 %159, %v157
    %v161 = vpop.permute.xlu0 %160
    %v164 = vcombine.high %v156, %v156
    %166 = vmatprep.subr.mxu0 0.0
    %167 = vmatpush1.xpose.msra.mxu0 0.0
    %168 = vmatprep.subr.mxu0 0.0
    %169 = vmatpush1.xpose.msra.mxu0 0.0
    %170 = vmatprep.subr.mxu0 0.0
    %171 = vmatpush1.xpose.msra.mxu0 0.0
    %172 = vmatprep.subr.mxu0 0.0
    %173 = vmatpush1.xpose.msra.mxu0 0.0
    %174 = vmatprep.subr.mxu0 0.0
    %175 = vmatpush1.xpose.msra.mxu0 0.0
    %176 = vmatprep.subr.mxu0 0.0
    %177 = vmatpush1.xpose.msra.mxu0 0.0
    %178 = vmatprep.subr.mxu0 0.0
    %179 = vmatpush1.xpose.msra.mxu0 0.0
    %180 = vmatprep.subr.mxu0 0.0
    %181 = vmatpush1.xpose.msra.mxu0 0.0
    %182 = vmatprep.subr.mxu0 0.0
    %183 = vmatpush1.xpose.msra.mxu0 0.0
    %184 = vmatprep.subr.mxu0 0.0
    %185 = vmatpush1.xpose.msra.mxu0 0.0
    %186 = vmatprep.subr.mxu0 0.0
    %187 = vmatpush1.xpose.msra.mxu0 0.0
    %188 = vmatprep.subr.mxu0 0.0
    %189 = vmatpush1.xpose.msra.mxu0 0.0
    %190 = vmatprep.subr.mxu0 0.0
    %191 = vmatpush1.xpose.msra.mxu0 0.0
    %192 = vmatprep.subr.mxu0 0.0
    %193 = vmatpush1.xpose.msra.mxu0 0.0
    %194 = vmatprep.subr.mxu0 0.0
    %195 = vmatpush1.xpose.msra.mxu0 0.0
    %196 = vmatprep.subr.mxu0 %v155
    %197 = vmatpush1.xpose.msra.mxu0 %v154
    %198 = vmatprep.subr.mxu0 0.0
    %199 = vmatpush2.xpose.msra.mxu0 0.0
    %200 = vmatprep.subr.mxu0 0.0
    %201 = vmatpush2.xpose.msra.mxu0 0.0
    %202 = vmatprep.subr.mxu0 0.0
    %203 = vmatpush2.xpose.msra.mxu0 0.0
    %204 = vmatprep.subr.mxu0 0.0
    %205 = vmatpush2.xpose.msra.mxu0 0.0
    %206 = vmatprep.subr.mxu0 0.0
    %207 = vmatpush2.xpose.msra.mxu0 0.0
    %208 = vmatprep.subr.mxu0 0.0
    %209 = vmatpush2.xpose.msra.mxu0 0.0
    %210 = vmatprep.subr.mxu0 0.0
    %211 = vmatpush2.xpose.msra.mxu0 0.0
    %212 = vmatprep.subr.mxu0 0.0
    %213 = vmatpush2.xpose.msra.mxu0 0.0
    %214 = vmatprep.subr.mxu0 0.0
    %215 = vmatpush2.xpose.msra.mxu0 0.0
    %216 = vmatprep.subr.mxu0 0.0
    %217 = vmatpush2.xpose.msra.mxu0 0.0
    %218 = vmatprep.subr.mxu0 0.0
    %219 = vmatpush2.xpose.msra.mxu0 0.0
    %220 = vmatprep.subr.mxu0 0.0
    %221 = vmatpush2.xpose.msra.mxu0 0.0
    %222 = vmatprep.subr.mxu0 0.0
    %223 = vmatpush2.xpose.msra.mxu0 0.0
    %224 = vmatprep.subr.mxu0 0.0
    %225 = vmatpush2.xpose.msra.mxu0 0.0
    %226 = vmatprep.subr.mxu0 0.0
    %227 = vmatpush2.xpose.msra.mxu0 0.0
    %228 = vmatprep.subr.mxu0 0.0
    %229 = vmatpush2.xpose.msra.mxu0 0.0
    %230 = vmatprep.mubr.f32.mxu0 %v164
    %231 = vmatmul.mubr.f32.gmra.mxu0 %v156
    %v232 = vpop.f32.mrf.mxu0
    %v233 = vadd.f32 %v161, %v232
    %v234 = vpop.f32.mrf.mxu0
    %235 = vdwg.mxu0
    %vm236 = vcmask 60416
    %237 = vst.msk [vmem:[#allocation7] sm:$0xf] %vm236, %v233
    // Predicated region
    $region30: #{mlp_forward.1} parent=1 // pred_check
      _
    $region31: #{mlp_forward.1} parent=1 // pred_check_branch
      %239 = sbr.rel (0) target = $region33
    $region32: #{mlp_forward.1} parent=1 // pred_region
      %s241 = ssub.s32 64, 64
      %242 = vsyncadd [#allocation4], %s241
      %s244 = sshll.u32 [#allocation7], 4
      %s245 = int_to_ptr.vmem [resolvable:$true] %s244
      %247 = dma.vmem_to_hbm [thread:$0]  %s245, 64, %s5, [#allocation4]
    $region33: #{mlp_forward.1} parent=1 // pred_fallthru
      _
    // Predicated region
    $region34: #{mlp_forward.1} parent=1 // pred_check
      _
    $region35: #{mlp_forward.1} parent=1 // pred_check_branch
      %249 = sbr.rel (0) target = $region37
    $region36: #{mlp_forward.1} parent=1 // pred_region
      %250 = dma.done [#allocation4], 64
    $region37: #{mlp_forward.1} parent=1 // pred_fallthru
      _
    %251 = vsyncpa [#allocation3], 1
    %252 = vsyncpa [#allocation6], 1
    %253 = vsyncpa [#allocation4], 1

</llo_original>
